<compile_context>
chip_gen: v7x
topology: tpu7x:2x2x1
jax: 0.10.0
libtpu: 0.0.40
codegen_flags: <defaults>
</compile_context>

<pallas_src>
import jax
import jax.numpy as jnp
from jax.experimental import pallas as pl
from jax.experimental.pallas import tpu as pltpu

_LANE = 128      # lane width  (last dim)
_SUBLANE = 8     # sublane width (second-to-last dim)


def _round_up(n, m):
    return ((n + m - 1) // m) * m


def _autoencoder_kernel(x_ref,
                        w1_ref, b1_ref, w2_ref, b2_ref, w3_ref, b3_ref,
                        w4_ref, b4_ref, w5_ref, b5_ref, w6_ref, b6_ref,
                        enc_ref, dec_ref):
    """Full encoder + decoder forward for one batch tile; all operands in VMEM."""

    def dense(h, w_ref, b_ref):
        # bf16 operands on the MXU, f32 accumulation, f32 bias add.
        return jnp.dot(h.astype(w_ref.dtype), w_ref[...],
                       preferred_element_type=jnp.float32) + b_ref[...]

    x = x_ref[...]

    # ---------------- encoder ----------------
    h = jnp.maximum(dense(x, w1_ref, b1_ref), 0.0)
    # TODO(synk): Dropout(0.2) is identity here (inference-mode semantics).
    h = jnp.maximum(dense(h, w2_ref, b2_ref), 0.0)
    enc = jnp.maximum(dense(h, w3_ref, b3_ref), 0.0)
    enc_ref[...] = enc.astype(enc_ref.dtype)

    # ---------------- decoder ----------------
    h = jnp.maximum(dense(enc, w4_ref, b4_ref), 0.0)
    h = jnp.maximum(dense(h, w5_ref, b5_ref), 0.0)
    dec = jax.nn.sigmoid(dense(h, w6_ref, b6_ref))
    dec_ref[...] = dec.astype(dec_ref.dtype)


def _linear_params(key, fan_in, fan_out, param_dtype):
    """torch.nn.Linear default init: U(-1/sqrt(fan_in), 1/sqrt(fan_in)).

    Weight is returned already transposed to [fan_in, fan_out] and cast to
    `param_dtype` (bf16 for the MXU); bias stays f32 (added post-accumulation).
    """
    kw, kb = jax.random.split(key)
    bound = 1.0 / float(fan_in) ** 0.5
    w = jax.random.uniform(kw, (fan_in, fan_out), jnp.float32, -bound, bound)
    b = jax.random.uniform(kb, (1, fan_out), jnp.float32, -bound, bound)
    return w.astype(param_dtype), b


def init_autoencoder_params(key, input_dim, hidden_dim, encoded_dim,
                            param_dtype=jnp.bfloat16):
    keys = jax.random.split(key, 6)
    dims = [(input_dim, hidden_dim), (hidden_dim, hidden_dim),
            (hidden_dim, encoded_dim),
            (encoded_dim, hidden_dim), (hidden_dim, hidden_dim),
            (hidden_dim, input_dim)]
    params = []
    for k, (fi, fo) in zip(keys, dims):
        params.extend(_linear_params(k, fi, fo, param_dtype))
    return tuple(params)  # (w1, b1, ..., w6, b6)


@jax.jit
def autoencoder_forward(x, params):
    w1, b1, w2, b2, w3, b3, w4, b4, w5, b5, w6, b6 = params
    batch, input_dim = x.shape
    hidden_dim = w1.shape[1]
    encoded_dim = w3.shape[1]

    # ---- pad feature dims to lane multiples (lane-dense loads/stores/MXU) ----
    in_p = _round_up(input_dim, _LANE)
    h_p = _round_up(hidden_dim, _LANE)
    e_p = _round_up(encoded_dim, _LANE)

    # ---- batch tiling: multiple of 8 rows, capped at 512 rows per tile ------
    tb = min(512, _round_up(batch, _SUBLANE))
    b_p = _round_up(batch, tb)
    n_tiles = b_p // tb

    def pad2(a, rows, cols):
        return jnp.pad(a, ((0, rows - a.shape[0]), (0, cols - a.shape[1])))

    x_p = pad2(x, b_p, in_p)
    padded_params = [
        pad2(w1, in_p, h_p), pad2(b1, 1, h_p),
        pad2(w2, h_p, h_p),  pad2(b2, 1, h_p),
        pad2(w3, h_p, e_p),  pad2(b3, 1, e_p),
        pad2(w4, e_p, h_p),  pad2(b4, 1, h_p),
        pad2(w5, h_p, h_p),  pad2(b5, 1, h_p),
        pad2(w6, h_p, in_p), pad2(b6, 1, in_p),
    ]

    # Batch axis gridded; parameters use a constant index_map so they are
    # DMA'd once and reused across every batch tile.
    x_spec = pl.BlockSpec((tb, in_p), lambda i: (i, 0))
    param_specs = [pl.BlockSpec(p.shape, lambda i: (0, 0)) for p in padded_params]
    enc_spec = pl.BlockSpec((tb, e_p), lambda i: (i, 0))
    dec_spec = pl.BlockSpec((tb, in_p), lambda i: (i, 0))

    # Advisory cost estimate for XLA's scheduler.
    flops = 2 * b_p * (in_p * h_p + h_p * h_p + h_p * e_p
                       + e_p * h_p + h_p * h_p + h_p * in_p)
    param_bytes = sum(int(p.size) * p.dtype.itemsize for p in padded_params)
    bytes_accessed = param_bytes + b_p * (in_p + e_p + in_p) * 4
    cost = pl.CostEstimate(flops=flops,
                           transcendentals=b_p * in_p,
                           bytes_accessed=bytes_accessed)

    enc_p, dec_p = pl.pallas_call(
        _autoencoder_kernel,
        out_shape=(jax.ShapeDtypeStruct((b_p, e_p), jnp.float32),
                   jax.ShapeDtypeStruct((b_p, in_p), jnp.float32)),
        grid=(n_tiles,),
        in_specs=[x_spec] + param_specs,
        out_specs=(enc_spec, dec_spec),
        compiler_params=pltpu.CompilerParams(
            dimension_semantics=("parallel",),      # v7x: split tiles over 2 TCs
            vmem_limit_bytes=32 * 1024 * 1024,      # sized for v7x 64 MiB phys.
        ),
        cost_estimate=cost,
    )(x_p, *padded_params)

    # Slice padding back off.
    return enc_p[:batch, :encoded_dim], dec_p[:batch, :input_dim]


def autoencoder_ref(x, params):
    """Pure-JAX reference with the same bf16-operand / f32-accumulate math."""
    w1, b1, w2, b2, w3, b3, w4, b4, w5, b5, w6, b6 = params

    def dense(h, w, b):
        return jnp.dot(h.astype(w.dtype), w,
                       preferred_element_type=jnp.float32) + b

    h = jnp.maximum(dense(x, w1, b1), 0.0)
    h = jnp.maximum(dense(h, w2, b2), 0.0)
    enc = jnp.maximum(dense(h, w3, b3), 0.0)
    h = jnp.maximum(dense(enc, w4, b4), 0.0)
    h = jnp.maximum(dense(h, w5, b5), 0.0)
    dec = jax.nn.sigmoid(dense(h, w6, b6))
    return enc, dec


if __name__ == "__main__":
    # Small shapes consistent with the module's forward: x is [batch, input_dim].
    batch, input_dim, hidden_dim, encoded_dim = 8, 16, 32, 8

    key = jax.random.PRNGKey(0)
    k_x, k_p = jax.random.split(key)
    x = jax.random.normal(k_x, (batch, input_dim), jnp.float32)
    params = init_autoencoder_params(k_p, input_dim, hidden_dim, encoded_dim)

    enc, dec = autoencoder_forward(x, params)
    jax.block_until_ready((enc, dec))

    enc_ref, dec_ref = autoencoder_ref(x, params)
    assert enc.shape == (batch, encoded_dim) and dec.shape == (batch, input_dim)
    assert jnp.allclose(enc, enc_ref, atol=2e-3, rtol=2e-3)
    assert jnp.allclose(dec, dec_ref, atol=2e-3, rtol=2e-3)

    print("KERNEL_OK")
</pallas_src>

<mosaic_0001>
module attributes {stable_mosaic.version = 11 : i64} {
  func.func @_autoencoder_kernel(%arg0: i32, %arg1: memref<8x128xf32, #tpu.memory_space<vmem>>, %arg2: memref<128x128xbf16, #tpu.memory_space<vmem>>, %arg3: memref<1x128xf32, #tpu.memory_space<vmem>>, %arg4: memref<128x128xbf16, #tpu.memory_space<vmem>>, %arg5: memref<1x128xf32, #tpu.memory_space<vmem>>, %arg6: memref<128x128xbf16, #tpu.memory_space<vmem>>, %arg7: memref<1x128xf32, #tpu.memory_space<vmem>>, %arg8: memref<128x128xbf16, #tpu.memory_space<vmem>>, %arg9: memref<1x128xf32, #tpu.memory_space<vmem>>, %arg10: memref<128x128xbf16, #tpu.memory_space<vmem>>, %arg11: memref<1x128xf32, #tpu.memory_space<vmem>>, %arg12: memref<128x128xbf16, #tpu.memory_space<vmem>>, %arg13: memref<1x128xf32, #tpu.memory_space<vmem>>, %arg14: memref<8x128xf32, #tpu.memory_space<vmem>>, %arg15: memref<8x128xf32, #tpu.memory_space<vmem>>) attributes {dimension_semantics = [#tpu.dimension_semantics<parallel>], iteration_bounds = array<i64: 1>, scalar_prefetch = 0 : i64, scratch_operands = 0 : i64, tpu.core_type = #tpu.core_type<tc>, window_params = [{transform_indices = @transform_0, window_bounds = array<i64: 8, 128>}, {pipeline_mode = #tpu.pipeline_mode<synchronous>, transform_indices = @transform_1, window_bounds = array<i64: 128, 128>}, {pipeline_mode = #tpu.pipeline_mode<synchronous>, transform_indices = @transform_2, window_bounds = array<i64: 1, 128>}, {pipeline_mode = #tpu.pipeline_mode<synchronous>, transform_indices = @transform_3, window_bounds = array<i64: 128, 128>}, {pipeline_mode = #tpu.pipeline_mode<synchronous>, transform_indices = @transform_4, window_bounds = array<i64: 1, 128>}, {pipeline_mode = #tpu.pipeline_mode<synchronous>, transform_indices = @transform_5, window_bounds = array<i64: 128, 128>}, {pipeline_mode = #tpu.pipeline_mode<synchronous>, transform_indices = @transform_6, window_bounds = array<i64: 1, 128>}, {pipeline_mode = #tpu.pipeline_mode<synchronous>, transform_indices = @transform_7, window_bounds = array<i64: 128, 128>}, {pipeline_mode = #tpu.pipeline_mode<synchronous>, transform_indices = @transform_8, window_bounds = array<i64: 1, 128>}, {pipeline_mode = #tpu.pipeline_mode<synchronous>, transform_indices = @transform_9, window_bounds = array<i64: 128, 128>}, {pipeline_mode = #tpu.pipeline_mode<synchronous>, transform_indices = @transform_10, window_bounds = array<i64: 1, 128>}, {pipeline_mode = #tpu.pipeline_mode<synchronous>, transform_indices = @transform_11, window_bounds = array<i64: 128, 128>}, {pipeline_mode = #tpu.pipeline_mode<synchronous>, transform_indices = @transform_12, window_bounds = array<i64: 1, 128>}, {transform_indices = @transform_13, window_bounds = array<i64: 8, 128>}, {transform_indices = @transform_14, window_bounds = array<i64: 8, 128>}]} {
    %c0 = arith.constant 0 : index
    %c0_0 = arith.constant 0 : index
    %0 = vector.load %arg1[%c0, %c0_0] : memref<8x128xf32, #tpu.memory_space<vmem>>, vector<8x128xf32>
    %1 = arith.truncf %0 : vector<8x128xf32> to vector<8x128xbf16>
    %c0_1 = arith.constant 0 : index
    %c0_2 = arith.constant 0 : index
    %2 = vector.load %arg2[%c0_1, %c0_2] : memref<128x128xbf16, #tpu.memory_space<vmem>>, vector<128x128xbf16>
    %cst = arith.constant dense<0.000000e+00> : vector<8x128xf32>
    %3 = tpu.matmul %1, %2, %cst {dimension_numbers = #tpu.dot_dimension_numbers<[1], [0], [0], [1], [0, 0, 1, 1], [], []>} : vector<8x128xbf16>, vector<128x128xbf16>, vector<8x128xf32> -> vector<8x128xf32>
    %c0_3 = arith.constant 0 : index
    %c0_4 = arith.constant 0 : index
    %4 = vector.load %arg3[%c0_3, %c0_4] : memref<1x128xf32, #tpu.memory_space<vmem>>, vector<1x128xf32>
    %5 = vector.broadcast %4 : vector<1x128xf32> to vector<8x128xf32>
    %6 = arith.addf %3, %5 : vector<8x128xf32>
    %cst_5 = arith.constant 0.000000e+00 : f32
    %7 = vector.broadcast %cst_5 : f32 to vector<8x128xf32>
    %8 = arith.maximumf %6, %7 : vector<8x128xf32>
    %9 = arith.truncf %8 : vector<8x128xf32> to vector<8x128xbf16>
    %c0_6 = arith.constant 0 : index
    %c0_7 = arith.constant 0 : index
    %10 = vector.load %arg4[%c0_6, %c0_7] : memref<128x128xbf16, #tpu.memory_space<vmem>>, vector<128x128xbf16>
    %cst_8 = arith.constant dense<0.000000e+00> : vector<8x128xf32>
    %11 = tpu.matmul %9, %10, %cst_8 {dimension_numbers = #tpu.dot_dimension_numbers<[1], [0], [0], [1], [0, 0, 1, 1], [], []>} : vector<8x128xbf16>, vector<128x128xbf16>, vector<8x128xf32> -> vector<8x128xf32>
    %c0_9 = arith.constant 0 : index
    %c0_10 = arith.constant 0 : index
    %12 = vector.load %arg5[%c0_9, %c0_10] : memref<1x128xf32, #tpu.memory_space<vmem>>, vector<1x128xf32>
    %13 = vector.broadcast %12 : vector<1x128xf32> to vector<8x128xf32>
    %14 = arith.addf %11, %13 : vector<8x128xf32>
    %cst_11 = arith.constant 0.000000e+00 : f32
    %15 = vector.broadcast %cst_11 : f32 to vector<8x128xf32>
    %16 = arith.maximumf %14, %15 : vector<8x128xf32>
    %17 = arith.truncf %16 : vector<8x128xf32> to vector<8x128xbf16>
    %c0_12 = arith.constant 0 : index
    %c0_13 = arith.constant 0 : index
    %18 = vector.load %arg6[%c0_12, %c0_13] : memref<128x128xbf16, #tpu.memory_space<vmem>>, vector<128x128xbf16>
    %cst_14 = arith.constant dense<0.000000e+00> : vector<8x128xf32>
    %19 = tpu.matmul %17, %18, %cst_14 {dimension_numbers = #tpu.dot_dimension_numbers<[1], [0], [0], [1], [0, 0, 1, 1], [], []>} : vector<8x128xbf16>, vector<128x128xbf16>, vector<8x128xf32> -> vector<8x128xf32>
    %c0_15 = arith.constant 0 : index
    %c0_16 = arith.constant 0 : index
    %20 = vector.load %arg7[%c0_15, %c0_16] : memref<1x128xf32, #tpu.memory_space<vmem>>, vector<1x128xf32>
    %21 = vector.broadcast %20 : vector<1x128xf32> to vector<8x128xf32>
    %22 = arith.addf %19, %21 : vector<8x128xf32>
    %cst_17 = arith.constant 0.000000e+00 : f32
    %23 = vector.broadcast %cst_17 : f32 to vector<8x128xf32>
    %24 = arith.maximumf %22, %23 : vector<8x128xf32>
    %c0_18 = arith.constant 0 : index
    %c0_19 = arith.constant 0 : index
    %25 = vector.load %arg14[%c0_18, %c0_19] : memref<8x128xf32, #tpu.memory_space<vmem>>, vector<8x128xf32>
    tpu.vector_store %arg14[%c0_18, %c0_19], %24 {strides = array<i32>} : memref<8x128xf32, #tpu.memory_space<vmem>>, vector<8x128xf32>,
    %26 = arith.truncf %24 : vector<8x128xf32> to vector<8x128xbf16>
    %c0_20 = arith.constant 0 : index
    %c0_21 = arith.constant 0 : index
    %27 = vector.load %arg8[%c0_20, %c0_21] : memref<128x128xbf16, #tpu.memory_space<vmem>>, vector<128x128xbf16>
    %cst_22 = arith.constant dense<0.000000e+00> : vector<8x128xf32>
    %28 = tpu.matmul %26, %27, %cst_22 {dimension_numbers = #tpu.dot_dimension_numbers<[1], [0], [0], [1], [0, 0, 1, 1], [], []>} : vector<8x128xbf16>, vector<128x128xbf16>, vector<8x128xf32> -> vector<8x128xf32>
    %c0_23 = arith.constant 0 : index
    %c0_24 = arith.constant 0 : index
    %29 = vector.load %arg9[%c0_23, %c0_24] : memref<1x128xf32, #tpu.memory_space<vmem>>, vector<1x128xf32>
    %30 = vector.broadcast %29 : vector<1x128xf32> to vector<8x128xf32>
    %31 = arith.addf %28, %30 : vector<8x128xf32>
    %cst_25 = arith.constant 0.000000e+00 : f32
    %32 = vector.broadcast %cst_25 : f32 to vector<8x128xf32>
    %33 = arith.maximumf %31, %32 : vector<8x128xf32>
    %34 = arith.truncf %33 : vector<8x128xf32> to vector<8x128xbf16>
    %c0_26 = arith.constant 0 : index
    %c0_27 = arith.constant 0 : index
    %35 = vector.load %arg10[%c0_26, %c0_27] : memref<128x128xbf16, #tpu.memory_space<vmem>>, vector<128x128xbf16>
    %cst_28 = arith.constant dense<0.000000e+00> : vector<8x128xf32>
    %36 = tpu.matmul %34, %35, %cst_28 {dimension_numbers = #tpu.dot_dimension_numbers<[1], [0], [0], [1], [0, 0, 1, 1], [], []>} : vector<8x128xbf16>, vector<128x128xbf16>, vector<8x128xf32> -> vector<8x128xf32>
    %c0_29 = arith.constant 0 : index
    %c0_30 = arith.constant 0 : index
    %37 = vector.load %arg11[%c0_29, %c0_30] : memref<1x128xf32, #tpu.memory_space<vmem>>, vector<1x128xf32>
    %38 = vector.broadcast %37 : vector<1x128xf32> to vector<8x128xf32>
    %39 = arith.addf %36, %38 : vector<8x128xf32>
    %cst_31 = arith.constant 0.000000e+00 : f32
    %40 = vector.broadcast %cst_31 : f32 to vector<8x128xf32>
    %41 = arith.maximumf %39, %40 : vector<8x128xf32>
    %42 = arith.truncf %41 : vector<8x128xf32> to vector<8x128xbf16>
    %c0_32 = arith.constant 0 : index
    %c0_33 = arith.constant 0 : index
    %43 = vector.load %arg12[%c0_32, %c0_33] : memref<128x128xbf16, #tpu.memory_space<vmem>>, vector<128x128xbf16>
    %cst_34 = arith.constant dense<0.000000e+00> : vector<8x128xf32>
    %44 = tpu.matmul %42, %43, %cst_34 {dimension_numbers = #tpu.dot_dimension_numbers<[1], [0], [0], [1], [0, 0, 1, 1], [], []>} : vector<8x128xbf16>, vector<128x128xbf16>, vector<8x128xf32> -> vector<8x128xf32>
    %c0_35 = arith.constant 0 : index
    %c0_36 = arith.constant 0 : index
    %45 = vector.load %arg13[%c0_35, %c0_36] : memref<1x128xf32, #tpu.memory_space<vmem>>, vector<1x128xf32>
    %46 = vector.broadcast %45 : vector<1x128xf32> to vector<8x128xf32>
    %47 = arith.addf %44, %46 : vector<8x128xf32>
    %48 = arith.negf %47 : vector<8x128xf32>
    %49 = math.exp %48 : vector<8x128xf32>
    %cst_37 = arith.constant 1.000000e+00 : f32
    %50 = vector.broadcast %cst_37 : f32 to vector<8x128xf32>
    %51 = arith.addf %50, %49 : vector<8x128xf32>
    %52 = arith.divf %50, %51 : vector<8x128xf32>
    %c0_38 = arith.constant 0 : index
    %c0_39 = arith.constant 0 : index
    %53 = vector.load %arg15[%c0_38, %c0_39] : memref<8x128xf32, #tpu.memory_space<vmem>>, vector<8x128xf32>
    tpu.vector_store %arg15[%c0_38, %c0_39], %52 {strides = array<i32>} : memref<8x128xf32, #tpu.memory_space<vmem>>, vector<8x128xf32>,
    return
  }
  func.func @transform_0(%arg0: i32) -> (i32, i32) {
    %c0_i32 = arith.constant 0 : i32
    %c0_i32_0 = arith.constant 0 : i32
    return %arg0, %c0_i32 : i32, i32
  }
  func.func @transform_1(%arg0: i32) -> (i32, i32) {
    %c0_i32 = arith.constant 0 : i32
    %c0_i32_0 = arith.constant 0 : i32
    %c0_i32_1 = arith.constant 0 : i32
    return %c0_i32, %c0_i32_0 : i32, i32
  }
  func.func @transform_2(%arg0: i32) -> (i32, i32) {
    %c0_i32 = arith.constant 0 : i32
    %c0_i32_0 = arith.constant 0 : i32
    %c0_i32_1 = arith.constant 0 : i32
    return %c0_i32, %c0_i32_0 : i32, i32
  }
  func.func @transform_3(%arg0: i32) -> (i32, i32) {
    %c0_i32 = arith.constant 0 : i32
    %c0_i32_0 = arith.constant 0 : i32
    %c0_i32_1 = arith.constant 0 : i32
    return %c0_i32, %c0_i32_0 : i32, i32
  }
  func.func @transform_4(%arg0: i32) -> (i32, i32) {
    %c0_i32 = arith.constant 0 : i32
    %c0_i32_0 = arith.constant 0 : i32
    %c0_i32_1 = arith.constant 0 : i32
    return %c0_i32, %c0_i32_0 : i32, i32
  }
  func.func @transform_5(%arg0: i32) -> (i32, i32) {
    %c0_i32 = arith.constant 0 : i32
    %c0_i32_0 = arith.constant 0 : i32
    %c0_i32_1 = arith.constant 0 : i32
    return %c0_i32, %c0_i32_0 : i32, i32
  }
  func.func @transform_6(%arg0: i32) -> (i32, i32) {
    %c0_i32 = arith.constant 0 : i32
    %c0_i32_0 = arith.constant 0 : i32
    %c0_i32_1 = arith.constant 0 : i32
    return %c0_i32, %c0_i32_0 : i32, i32
  }
  func.func @transform_7(%arg0: i32) -> (i32, i32) {
    %c0_i32 = arith.constant 0 : i32
    %c0_i32_0 = arith.constant 0 : i32
    %c0_i32_1 = arith.constant 0 : i32
    return %c0_i32, %c0_i32_0 : i32, i32
  }
  func.func @transform_8(%arg0: i32) -> (i32, i32) {
    %c0_i32 = arith.constant 0 : i32
    %c0_i32_0 = arith.constant 0 : i32
    %c0_i32_1 = arith.constant 0 : i32
    return %c0_i32, %c0_i32_0 : i32, i32
  }
  func.func @transform_9(%arg0: i32) -> (i32, i32) {
    %c0_i32 = arith.constant 0 : i32
    %c0_i32_0 = arith.constant 0 : i32
    %c0_i32_1 = arith.constant 0 : i32
    return %c0_i32, %c0_i32_0 : i32, i32
  }
  func.func @transform_10(%arg0: i32) -> (i32, i32) {
    %c0_i32 = arith.constant 0 : i32
    %c0_i32_0 = arith.constant 0 : i32
    %c0_i32_1 = arith.constant 0 : i32
    return %c0_i32, %c0_i32_0 : i32, i32
  }
  func.func @transform_11(%arg0: i32) -> (i32, i32) {
    %c0_i32 = arith.constant 0 : i32
    %c0_i32_0 = arith.constant 0 : i32
    %c0_i32_1 = arith.constant 0 : i32
    return %c0_i32, %c0_i32_0 : i32, i32
  }
  func.func @transform_12(%arg0: i32) -> (i32, i32) {
    %c0_i32 = arith.constant 0 : i32
    %c0_i32_0 = arith.constant 0 : i32
    %c0_i32_1 = arith.constant 0 : i32
    return %c0_i32, %c0_i32_0 : i32, i32
  }
  func.func @transform_13(%arg0: i32) -> (i32, i32) {
    %c0_i32 = arith.constant 0 : i32
    %c0_i32_0 = arith.constant 0 : i32
    return %arg0, %c0_i32 : i32, i32
  }
  func.func @transform_14(%arg0: i32) -> (i32, i32) {
    %c0_i32 = arith.constant 0 : i32
    %c0_i32_0 = arith.constant 0 : i32
    return %arg0, %c0_i32 : i32, i32
  }
}

</mosaic_0001>

<llo_original>
// kernel: autoencoder_forward.1
$region0: #{autoencoder_forward.1}
  #allocation0 [shape = 'u32[]', space=smem, size = 0x4, offset = 0x4, fixed_abs, tag = 'smem constant byte address 0x4 - core index']
  #allocation1 [shape = 'u32[144,128]{1,0:T(1,128)}', space=vmem, size = 0x12000, scoped, tag = 'internal scratch']
  %s0 = inlined_call_operand.vmem [shape: f32[8,128], index: 0, kind: input, shape index: {}]
  %s1 = inlined_call_operand.vmem [shape: bf16[128,128], index: 1, kind: input, shape index: {}]
  %s2 = inlined_call_operand.vmem [shape: f32[1,128], index: 2, kind: input, shape index: {}]
  %s3 = inlined_call_operand.vmem [shape: bf16[128,128], index: 3, kind: input, shape index: {}]
  %s4 = inlined_call_operand.vmem [shape: f32[1,128], index: 4, kind: input, shape index: {}]
  %s5 = inlined_call_operand.vmem [shape: bf16[128,128], index: 5, kind: input, shape index: {}]
  %s6 = inlined_call_operand.vmem [shape: f32[1,128], index: 6, kind: input, shape index: {}]
  %s7 = inlined_call_operand.vmem [shape: bf16[128,128], index: 7, kind: input, shape index: {}]
  %s8 = inlined_call_operand.vmem [shape: f32[1,128], index: 8, kind: input, shape index: {}]
  %s9 = inlined_call_operand.vmem [shape: bf16[128,128], index: 9, kind: input, shape index: {}]
  %s10 = inlined_call_operand.vmem [shape: f32[1,128], index: 10, kind: input, shape index: {}]
  %s11 = inlined_call_operand.vmem [shape: bf16[128,128], index: 11, kind: input, shape index: {}]
  %s12 = inlined_call_operand.vmem [shape: f32[1,128], index: 12, kind: input, shape index: {}]
  %s13 = inlined_call_operand.hbm [shape: f32[8,128], index: 13, kind: output, shape index: {0}]
  %s14 = inlined_call_operand.hbm [shape: f32[8,128], index: 14, kind: output, shape index: {1}]
  %15 = xla_tuple %s13, %s14
  %s16 = sld [smem:[#allocation0]]
  $region70: #{autoencoder_forward.1} parent=0
    _
  %s18 = ssub.s32 1, %s16
  %s19 = scalar_select 0, %s18, %s16
  $region1: #{autoencoder_forward.1} parent=0
    #allocation2 [shape = 'u8[4096]{0}', space=vmem, size = 0x1000, scoped, tag = 'output window, operand 0, single buffered']
    #allocation3 [shape = 's32[1]{0}', space=sflag, size = 0x4, scoped, tag = 'scoped memory for autoencoder_forward.1']
    #allocation4 [shape = 'u8[4096]{0}', space=vmem, size = 0x1000, scoped, tag = 'output window, operand 1, single buffered']
    #allocation5 [shape = 's32[1]{0}', space=sflag, size = 0x4, scoped, tag = 'scoped memory for autoencoder_forward.1']
    %20 = vsyncpa [#allocation3], 0
    %21 = vsyncpa [#allocation5], 0
    // Predicated region
    $region2: #{autoencoder_forward.1} parent=1 // pred_check
      _
    $region3: #{autoencoder_forward.1} parent=1 // pred_check_branch
      %23 = sbr.rel (0) target = $region5
    $region4: #{autoencoder_forward.1} parent=1 // pred_region
      _
    $region5: #{autoencoder_forward.1} parent=1 // pred_fallthru
      _
    // Predicated region
    $region6: #{autoencoder_forward.1} parent=1 // pred_check
      _
    $region7: #{autoencoder_forward.1} parent=1 // pred_check_branch
      %25 = sbr.rel (0) target = $region9
    $region8: #{autoencoder_forward.1} parent=1 // pred_region
      _
    $region9: #{autoencoder_forward.1} parent=1 // pred_fallthru
      _
    // Predicated region
    $region10: #{autoencoder_forward.1} parent=1 // pred_check
      _
    $region11: #{autoencoder_forward.1} parent=1 // pred_check_branch
      %27 = sbr.rel (0) target = $region13
    $region12: #{autoencoder_forward.1} parent=1 // pred_region
      _
    $region13: #{autoencoder_forward.1} parent=1 // pred_fallthru
      _
    // Predicated region
    $region14: #{autoencoder_forward.1} parent=1 // pred_check
      _
    $region15: #{autoencoder_forward.1} parent=1 // pred_check_branch
      %29 = sbr.rel (0) target = $region17
    $region16: #{autoencoder_forward.1} parent=1 // pred_region
      _
    $region17: #{autoencoder_forward.1} parent=1 // pred_fallthru
      _
    // Predicated region
    $region18: #{autoencoder_forward.1} parent=1 // pred_check
      _
    $region19: #{autoencoder_forward.1} parent=1 // pred_check_branch
      %31 = sbr.rel (0) target = $region21
    $region20: #{autoencoder_forward.1} parent=1 // pred_region
      _
    $region21: #{autoencoder_forward.1} parent=1 // pred_fallthru
      _
    // Predicated region
    $region22: #{autoencoder_forward.1} parent=1 // pred_check
      _
    $region23: #{autoencoder_forward.1} parent=1 // pred_check_branch
      %33 = sbr.rel (0) target = $region25
    $region24: #{autoencoder_forward.1} parent=1 // pred_region
      _
    $region25: #{autoencoder_forward.1} parent=1 // pred_fallthru
      _
    // Predicated region
    $region26: #{autoencoder_forward.1} parent=1 // pred_check
      _
    $region27: #{autoencoder_forward.1} parent=1 // pred_check_branch
      %35 = sbr.rel (0) target = $region29
    $region28: #{autoencoder_forward.1} parent=1 // pred_region
      _
    $region29: #{autoencoder_forward.1} parent=1 // pred_fallthru
      _
    // Predicated region
    $region30: #{autoencoder_forward.1} parent=1 // pred_check
      _
    $region31: #{autoencoder_forward.1} parent=1 // pred_check_branch
      %37 = sbr.rel (0) target = $region33
    $region32: #{autoencoder_forward.1} parent=1 // pred_region
      _
    $region33: #{autoencoder_forward.1} parent=1 // pred_fallthru
      _
    // Predicated region
    $region34: #{autoencoder_forward.1} parent=1 // pred_check
      _
    $region35: #{autoencoder_forward.1} parent=1 // pred_check_branch
      %39 = sbr.rel (0) target = $region37
    $region36: #{autoencoder_forward.1} parent=1 // pred_region
      _
    $region37: #{autoencoder_forward.1} parent=1 // pred_fallthru
      _
    // Predicated region
    $region38: #{autoencoder_forward.1} parent=1 // pred_check
      _
    $region39: #{autoencoder_forward.1} parent=1 // pred_check_branch
      %41 = sbr.rel (0) target = $region41
    $region40: #{autoencoder_forward.1} parent=1 // pred_region
      _
    $region41: #{autoencoder_forward.1} parent=1 // pred_fallthru
      _
    // Predicated region
    $region42: #{autoencoder_forward.1} parent=1 // pred_check
      _
    $region43: #{autoencoder_forward.1} parent=1 // pred_check_branch
      %43 = sbr.rel (0) target = $region45
    $region44: #{autoencoder_forward.1} parent=1 // pred_region
      _
    $region45: #{autoencoder_forward.1} parent=1 // pred_fallthru
      _
    // Predicated region
    $region46: #{autoencoder_forward.1} parent=1 // pred_check
      _
    $region47: #{autoencoder_forward.1} parent=1 // pred_check_branch
      %45 = sbr.rel (0) target = $region49
    $region48: #{autoencoder_forward.1} parent=1 // pred_region
      _
    $region49: #{autoencoder_forward.1} parent=1 // pred_fallthru
      _
    // Predicated region
    $region50: #{autoencoder_forward.1} parent=1 // pred_check
      _
    $region51: #{autoencoder_forward.1} parent=1 // pred_check_branch
      %47 = sbr.rel (0) target = $region53
    $region52: #{autoencoder_forward.1} parent=1 // pred_region
      _
    $region53: #{autoencoder_forward.1} parent=1 // pred_fallthru
      _
    %v49 = vld [vmem:[%s0] sm:$0xff]
    %v50 = vpack.c.bf16 %v49, %v49
    %v51 = vld [vmem:[%s1] sm:$0xf]
    %v52 = vld [vmem:[%s1 + $0x4] sm:$0xf]
    %v53 = vld [vmem:[%s1 + $0x8] sm:$0xf]
    %v54 = vld [vmem:[%s1 + $0xc] sm:$0xf]
    %v55 = vld [vmem:[%s1 + $0x10] sm:$0xf]
    %v56 = vld [vmem:[%s1 + $0x14] sm:$0xf]
    %v57 = vld [vmem:[%s1 + $0x18] sm:$0xf]
    %v58 = vld [vmem:[%s1 + $0x1c] sm:$0xf]
    %v59 = vld [vmem:[%s1 + $0x20] sm:$0xf]
    %v60 = vld [vmem:[%s1 + $0x24] sm:$0xf]
    %v61 = vld [vmem:[%s1 + $0x28] sm:$0xf]
    %v62 = vld [vmem:[%s1 + $0x2c] sm:$0xf]
    %v63 = vld [vmem:[%s1 + $0x30] sm:$0xf]
    %v64 = vld [vmem:[%s1 + $0x34] sm:$0xf]
    %v65 = vld [vmem:[%s1 + $0x38] sm:$0xf]
    %v66 = vld [vmem:[%s1 + $0x3c] sm:$0xf]
    %v67 = vld [vmem:[%s2] sm:$0x1]
    %v69 = vlaneseq
    %v70 = vshrl.u32 %v69, 7
    %v71 = vsub.s32 0, %v70
    %v72 = vrot.slane %v67, %v71
    %v90 = vunpack.c.l.b16 %v51
    %v91 = vunpack.c.l.b16 %v52
    %v92 = vunpack.c.l.b16 %v53
    %v93 = vunpack.c.l.b16 %v54
    %v94 = vunpack.c.l.b16 %v55
    %v95 = vunpack.c.l.b16 %v56
    %v96 = vunpack.c.l.b16 %v57
    %v97 = vunpack.c.l.b16 %v58
    %v98 = vunpack.c.l.b16 %v59
    %v99 = vunpack.c.l.b16 %v60
    %v100 = vunpack.c.l.b16 %v61
    %v101 = vunpack.c.l.b16 %v62
    %v102 = vunpack.c.l.b16 %v63
    %v103 = vunpack.c.l.b16 %v64
    %v104 = vunpack.c.l.b16 %v65
    %v105 = vunpack.c.l.b16 %v66
    %v106 = vpack.c.b16 %v91, %v90
    %v107 = vpack.c.b16 %v93, %v92
    %v108 = vpack.c.b16 %v95, %v94
    %v109 = vpack.c.b16 %v97, %v96
    %v110 = vpack.c.b16 %v99, %v98
    %v111 = vpack.c.b16 %v101, %v100
    %v112 = vpack.c.b16 %v103, %v102
    %v113 = vpack.c.b16 %v105, %v104
    %122 = vmatprep.subr.bf16.mxu0 0
    %123 = vmatpush1.bf16.msra.mxu0 %v106
    %124 = vmatprep.subr.bf16.mxu0 0
    %125 = vmatpush1.bf16.msra.mxu0 %v107
    %126 = vmatprep.subr.bf16.mxu0 0
    %127 = vmatpush1.bf16.msra.mxu0 %v108
    %128 = vmatprep.subr.bf16.mxu0 0
    %129 = vmatpush1.bf16.msra.mxu0 %v109
    %130 = vmatprep.subr.bf16.mxu0 0
    %131 = vmatpush1.bf16.msra.mxu0 %v110
    %132 = vmatprep.subr.bf16.mxu0 0
    %133 = vmatpush1.bf16.msra.mxu0 %v111
    %134 = vmatprep.subr.bf16.mxu0 0
    %135 = vmatpush1.bf16.msra.mxu0 %v112
    %136 = vmatprep.subr.bf16.mxu0 0
    %137 = vmatpush1.bf16.msra.mxu0 %v113
    %138 = vmatprep.subr.bf16.mxu0 0
    %139 = vmatpush1.bf16.msra.mxu0 0
    %140 = vmatprep.subr.bf16.mxu0 0
    %141 = vmatpush1.bf16.msra.mxu0 0
    %142 = vmatprep.subr.bf16.mxu0 0
    %143 = vmatpush1.bf16.msra.mxu0 0
    %144 = vmatprep.subr.bf16.mxu0 0
    %145 = vmatpush1.bf16.msra.mxu0 0
    %146 = vmatprep.subr.bf16.mxu0 0
    %147 = vmatpush1.bf16.msra.mxu0 0
    %148 = vmatprep.subr.bf16.mxu0 0
    %149 = vmatpush1.bf16.msra.mxu0 0
    %150 = vmatprep.subr.bf16.mxu0 0
    %151 = vmatpush1.bf16.msra.mxu0 0
    %152 = vmatprep.subr.bf16.mxu0 0
    %153 = vmatpush1.bf16.msra.mxu0 0
    %154 = vmatprep.mubr.bf16.mxu0 0
    %155 = vmatmul.mubr.bf16.gmra.mrb[0].mxu0 %v50
    %v156 = vpop.f32.mrb[0].mxu0
    %v157 = vadd.f32 %v72, %v156
    %v158 = vpop.f32.mrb[0].mxu0
    %v159 = vpop.f32.mrb[0].mxu0
    %v160 = vpop.f32.mrb[0].mxu0
    %161 = vdwg.mxu0
    %v162 = vmax.f32 %v157, 0.0
    %v163 = vpack.c.bf16 %v162, %v162
    %v164 = vld [vmem:[%s3] sm:$0xf]
    %v165 = vld [vmem:[%s3 + $0x4] sm:$0xf]
    %v166 = vld [vmem:[%s3 + $0x8] sm:$0xf]
    %v167 = vld [vmem:[%s3 + $0xc] sm:$0xf]
    %v168 = vld [vmem:[%s3 + $0x10] sm:$0xf]
    %v169 = vld [vmem:[%s3 + $0x14] sm:$0xf]
    %v170 = vld [vmem:[%s3 + $0x18] sm:$0xf]
    %v171 = vld [vmem:[%s3 + $0x1c] sm:$0xf]
    %v172 = vld [vmem:[%s3 + $0x20] sm:$0xf]
    %v173 = vld [vmem:[%s3 + $0x24] sm:$0xf]
    %v174 = vld [vmem:[%s3 + $0x28] sm:$0xf]
    %v175 = vld [vmem:[%s3 + $0x2c] sm:$0xf]
    %v176 = vld [vmem:[%s3 + $0x30] sm:$0xf]
    %v177 = vld [vmem:[%s3 + $0x34] sm:$0xf]
    %v178 = vld [vmem:[%s3 + $0x38] sm:$0xf]
    %v179 = vld [vmem:[%s3 + $0x3c] sm:$0xf]
    %v180 = vld [vmem:[%s4] sm:$0x1]
    %v182 = vlaneseq
    %v183 = vshrl.u32 %v182, 7
    %v184 = vsub.s32 0, %v183
    %v185 = vrot.slane %v180, %v184
    %v203 = vunpack.c.l.b16 %v164
    %v204 = vunpack.c.l.b16 %v165
    %v205 = vunpack.c.l.b16 %v166
    %v206 = vunpack.c.l.b16 %v167
    %v207 = vunpack.c.l.b16 %v168
    %v208 = vunpack.c.l.b16 %v169
    %v209 = vunpack.c.l.b16 %v170
    %v210 = vunpack.c.l.b16 %v171
    %v211 = vunpack.c.l.b16 %v172
    %v212 = vunpack.c.l.b16 %v173
    %v213 = vunpack.c.l.b16 %v174
    %v214 = vunpack.c.l.b16 %v175
    %v215 = vunpack.c.l.b16 %v176
    %v216 = vunpack.c.l.b16 %v177
    %v217 = vunpack.c.l.b16 %v178
    %v218 = vunpack.c.l.b16 %v179
    %v219 = vpack.c.b16 %v204, %v203
    %v220 = vpack.c.b16 %v206, %v205
    %v221 = vpack.c.b16 %v208, %v207
    %v222 = vpack.c.b16 %v210, %v209
    %v223 = vpack.c.b16 %v212, %v211
    %v224 = vpack.c.b16 %v214, %v213
    %v225 = vpack.c.b16 %v216, %v215
    %v226 = vpack.c.b16 %v218, %v217
    %235 = vmatprep.subr.bf16.mxu0 0
    %236 = vmatpush1.bf16.msra.mxu0 %v219
    %237 = vmatprep.subr.bf16.mxu0 0
    %238 = vmatpush1.bf16.msra.mxu0 %v220
    %239 = vmatprep.subr.bf16.mxu0 0
    %240 = vmatpush1.bf16.msra.mxu0 %v221
    %241 = vmatprep.subr.bf16.mxu0 0
    %242 = vmatpush1.bf16.msra.mxu0 %v222
    %243 = vmatprep.subr.bf16.mxu0 0
    %244 = vmatpush1.bf16.msra.mxu0 %v223
    %245 = vmatprep.subr.bf16.mxu0 0
    %246 = vmatpush1.bf16.msra.mxu0 %v224
    %247 = vmatprep.subr.bf16.mxu0 0
    %248 = vmatpush1.bf16.msra.mxu0 %v225
    %249 = vmatprep.subr.bf16.mxu0 0
    %250 = vmatpush1.bf16.msra.mxu0 %v226
    %251 = vmatprep.subr.bf16.mxu0 0
    %252 = vmatpush1.bf16.msra.mxu0 0
    %253 = vmatprep.subr.bf16.mxu0 0
    %254 = vmatpush1.bf16.msra.mxu0 0
    %255 = vmatprep.subr.bf16.mxu0 0
    %256 = vmatpush1.bf16.msra.mxu0 0
    %257 = vmatprep.subr.bf16.mxu0 0
    %258 = vmatpush1.bf16.msra.mxu0 0
    %259 = vmatprep.subr.bf16.mxu0 0
    %260 = vmatpush1.bf16.msra.mxu0 0
    %261 = vmatprep.subr.bf16.mxu0 0
    %262 = vmatpush1.bf16.msra.mxu0 0
    %263 = vmatprep.subr.bf16.mxu0 0
    %264 = vmatpush1.bf16.msra.mxu0 0
    %265 = vmatprep.subr.bf16.mxu0 0
    %266 = vmatpush1.bf16.msra.mxu0 0
    %267 = vmatprep.mubr.bf16.mxu0 0
    %268 = vmatmul.mubr.bf16.gmra.mrb[0].mxu0 %v163
    %v269 = vpop.f32.mrb[0].mxu0
    %v270 = vadd.f32 %v185, %v269
    %v271 = vpop.f32.mrb[0].mxu0
    %v272 = vpop.f32.mrb[0].mxu0
    %v273 = vpop.f32.mrb[0].mxu0
    %274 = vdwg.mxu0
    %v275 = vmax.f32 %v270, 0.0
    %v276 = vpack.c.bf16 %v275, %v275
    %v277 = vld [vmem:[%s5] sm:$0xf]
    %v278 = vld [vmem:[%s5 + $0x4] sm:$0xf]
    %v279 = vld [vmem:[%s5 + $0x8] sm:$0xf]
    %v280 = vld [vmem:[%s5 + $0xc] sm:$0xf]
    %v281 = vld [vmem:[%s5 + $0x10] sm:$0xf]
    %v282 = vld [vmem:[%s5 + $0x14] sm:$0xf]
    %v283 = vld [vmem:[%s5 + $0x18] sm:$0xf]
    %v284 = vld [vmem:[%s5 + $0x1c] sm:$0xf]
    %v285 = vld [vmem:[%s5 + $0x20] sm:$0xf]
    %v286 = vld [vmem:[%s5 + $0x24] sm:$0xf]
    %v287 = vld [vmem:[%s5 + $0x28] sm:$0xf]
    %v288 = vld [vmem:[%s5 + $0x2c] sm:$0xf]
    %v289 = vld [vmem:[%s5 + $0x30] sm:$0xf]
    %v290 = vld [vmem:[%s5 + $0x34] sm:$0xf]
    %v291 = vld [vmem:[%s5 + $0x38] sm:$0xf]
    %v292 = vld [vmem:[%s5 + $0x3c] sm:$0xf]
    %v293 = vld [vmem:[%s6] sm:$0x1]
    %v295 = vlaneseq
    %v296 = vshrl.u32 %v295, 7
    %v297 = vsub.s32 0, %v296
    %v298 = vrot.slane %v293, %v297
    %v316 = vunpack.c.l.b16 %v277
    %v317 = vunpack.c.l.b16 %v278
    %v318 = vunpack.c.l.b16 %v279
    %v319 = vunpack.c.l.b16 %v280
    %v320 = vunpack.c.l.b16 %v281
    %v321 = vunpack.c.l.b16 %v282
    %v322 = vunpack.c.l.b16 %v283
    %v323 = vunpack.c.l.b16 %v284
    %v324 = vunpack.c.l.b16 %v285
    %v325 = vunpack.c.l.b16 %v286
    %v326 = vunpack.c.l.b16 %v287
    %v327 = vunpack.c.l.b16 %v288
    %v328 = vunpack.c.l.b16 %v289
    %v329 = vunpack.c.l.b16 %v290
    %v330 = vunpack.c.l.b16 %v291
    %v331 = vunpack.c.l.b16 %v292
    %v332 = vpack.c.b16 %v317, %v316
    %v333 = vpack.c.b16 %v319, %v318
    %v334 = vpack.c.b16 %v321, %v320
    %v335 = vpack.c.b16 %v323, %v322
    %v336 = vpack.c.b16 %v325, %v324
    %v337 = vpack.c.b16 %v327, %v326
    %v338 = vpack.c.b16 %v329, %v328
    %v339 = vpack.c.b16 %v331, %v330
    %348 = vmatprep.subr.bf16.mxu0 0
    %349 = vmatpush1.bf16.msra.mxu0 %v332
    %350 = vmatprep.subr.bf16.mxu0 0
    %351 = vmatpush1.bf16.msra.mxu0 %v333
    %352 = vmatprep.subr.bf16.mxu0 0
    %353 = vmatpush1.bf16.msra.mxu0 %v334
    %354 = vmatprep.subr.bf16.mxu0 0
    %355 = vmatpush1.bf16.msra.mxu0 %v335
    %356 = vmatprep.subr.bf16.mxu0 0
    %357 = vmatpush1.bf16.msra.mxu0 %v336
    %358 = vmatprep.subr.bf16.mxu0 0
    %359 = vmatpush1.bf16.msra.mxu0 %v337
    %360 = vmatprep.subr.bf16.mxu0 0
    %361 = vmatpush1.bf16.msra.mxu0 %v338
    %362 = vmatprep.subr.bf16.mxu0 0
    %363 = vmatpush1.bf16.msra.mxu0 %v339
    %364 = vmatprep.subr.bf16.mxu0 0
    %365 = vmatpush1.bf16.msra.mxu0 0
    %366 = vmatprep.subr.bf16.mxu0 0
    %367 = vmatpush1.bf16.msra.mxu0 0
    %368 = vmatprep.subr.bf16.mxu0 0
    %369 = vmatpush1.bf16.msra.mxu0 0
    %370 = vmatprep.subr.bf16.mxu0 0
    %371 = vmatpush1.bf16.msra.mxu0 0
    %372 = vmatprep.subr.bf16.mxu0 0
    %373 = vmatpush1.bf16.msra.mxu0 0
    %374 = vmatprep.subr.bf16.mxu0 0
    %375 = vmatpush1.bf16.msra.mxu0 0
    %376 = vmatprep.subr.bf16.mxu0 0
    %377 = vmatpush1.bf16.msra.mxu0 0
    %378 = vmatprep.subr.bf16.mxu0 0
    %379 = vmatpush1.bf16.msra.mxu0 0
    %380 = vmatprep.mubr.bf16.mxu0 0
    %381 = vmatmul.mubr.bf16.gmra.mrb[0].mxu0 %v276
    %v382 = vpop.f32.mrb[0].mxu0
    %v383 = vadd.f32 %v298, %v382
    %v384 = vpop.f32.mrb[0].mxu0
    %v385 = vpop.f32.mrb[0].mxu0
    %v386 = vpop.f32.mrb[0].mxu0
    %387 = vdwg.mxu0
    %v388 = vmax.f32 %v383, 0.0
    %389 = vst [vmem:[#allocation2] sm:$0xff] %v388
    %v390 = vpack.c.bf16 %v388, %v388
    %v391 = vld [vmem:[%s7] sm:$0xf]
    %v392 = vld [vmem:[%s7 + $0x4] sm:$0xf]
    %v393 = vld [vmem:[%s7 + $0x8] sm:$0xf]
    %v394 = vld [vmem:[%s7 + $0xc] sm:$0xf]
    %v395 = vld [vmem:[%s7 + $0x10] sm:$0xf]
    %v396 = vld [vmem:[%s7 + $0x14] sm:$0xf]
    %v397 = vld [vmem:[%s7 + $0x18] sm:$0xf]
    %v398 = vld [vmem:[%s7 + $0x1c] sm:$0xf]
    %v399 = vld [vmem:[%s7 + $0x20] sm:$0xf]
    %v400 = vld [vmem:[%s7 + $0x24] sm:$0xf]
    %v401 = vld [vmem:[%s7 + $0x28] sm:$0xf]
    %v402 = vld [vmem:[%s7 + $0x2c] sm:$0xf]
    %v403 = vld [vmem:[%s7 + $0x30] sm:$0xf]
    %v404 = vld [vmem:[%s7 + $0x34] sm:$0xf]
    %v405 = vld [vmem:[%s7 + $0x38] sm:$0xf]
    %v406 = vld [vmem:[%s7 + $0x3c] sm:$0xf]
    %v407 = vld [vmem:[%s8] sm:$0x1]
    %v409 = vlaneseq
    %v410 = vshrl.u32 %v409, 7
    %v411 = vsub.s32 0, %v410
    %v412 = vrot.slane %v407, %v411
    %v430 = vunpack.c.l.b16 %v391
    %v431 = vunpack.c.l.b16 %v392
    %v432 = vunpack.c.l.b16 %v393
    %v433 = vunpack.c.l.b16 %v394
    %v434 = vunpack.c.l.b16 %v395
    %v435 = vunpack.c.l.b16 %v396
    %v436 = vunpack.c.l.b16 %v397
    %v437 = vunpack.c.l.b16 %v398
    %v438 = vunpack.c.l.b16 %v399
    %v439 = vunpack.c.l.b16 %v400
    %v440 = vunpack.c.l.b16 %v401
    %v441 = vunpack.c.l.b16 %v402
    %v442 = vunpack.c.l.b16 %v403
    %v443 = vunpack.c.l.b16 %v404
    %v444 = vunpack.c.l.b16 %v405
    %v445 = vunpack.c.l.b16 %v406
    %v446 = vpack.c.b16 %v431, %v430
    %v447 = vpack.c.b16 %v433, %v432
    %v448 = vpack.c.b16 %v435, %v434
    %v449 = vpack.c.b16 %v437, %v436
    %v450 = vpack.c.b16 %v439, %v438
    %v451 = vpack.c.b16 %v441, %v440
    %v452 = vpack.c.b16 %v443, %v442
    %v453 = vpack.c.b16 %v445, %v444
    %462 = vmatprep.subr.bf16.mxu0 0
    %463 = vmatpush1.bf16.msra.mxu0 %v446
    %464 = vmatprep.subr.bf16.mxu0 0
    %465 = vmatpush1.bf16.msra.mxu0 %v447
    %466 = vmatprep.subr.bf16.mxu0 0
    %467 = vmatpush1.bf16.msra.mxu0 %v448
    %468 = vmatprep.subr.bf16.mxu0 0
    %469 = vmatpush1.bf16.msra.mxu0 %v449
    %470 = vmatprep.subr.bf16.mxu0 0
    %471 = vmatpush1.bf16.msra.mxu0 %v450
    %472 = vmatprep.subr.bf16.mxu0 0
    %473 = vmatpush1.bf16.msra.mxu0 %v451
    %474 = vmatprep.subr.bf16.mxu0 0
    %475 = vmatpush1.bf16.msra.mxu0 %v452
    %476 = vmatprep.subr.bf16.mxu0 0
    %477 = vmatpush1.bf16.msra.mxu0 %v453
    %478 = vmatprep.subr.bf16.mxu0 0
    %479 = vmatpush1.bf16.msra.mxu0 0
    %480 = vmatprep.subr.bf16.mxu0 0
    %481 = vmatpush1.bf16.msra.mxu0 0
    %482 = vmatprep.subr.bf16.mxu0 0
    %483 = vmatpush1.bf16.msra.mxu0 0
    %484 = vmatprep.subr.bf16.mxu0 0
    %485 = vmatpush1.bf16.msra.mxu0 0
    %486 = vmatprep.subr.bf16.mxu0 0
    %487 = vmatpush1.bf16.msra.mxu0 0
    %488 = vmatprep.subr.bf16.mxu0 0
    %489 = vmatpush1.bf16.msra.mxu0 0
    %490 = vmatprep.subr.bf16.mxu0 0
    %491 = vmatpush1.bf16.msra.mxu0 0
    %492 = vmatprep.subr.bf16.mxu0 0
    %493 = vmatpush1.bf16.msra.mxu0 0
    %494 = vmatprep.mubr.bf16.mxu0 0
    %495 = vmatmul.mubr.bf16.gmra.mrb[0].mxu0 %v390
    %v496 = vpop.f32.mrb[0].mxu0
    %v497 = vadd.f32 %v412, %v496
    %v498 = vpop.f32.mrb[0].mxu0
    %v499 = vpop.f32.mrb[0].mxu0
    %v500 = vpop.f32.mrb[0].mxu0
    %501 = vdwg.mxu0
    %v502 = vmax.f32 %v497, 0.0
    %v503 = vpack.c.bf16 %v502, %v502
    %v504 = vld [vmem:[%s9] sm:$0xf]
    %v505 = vld [vmem:[%s9 + $0x4] sm:$0xf]
    %v506 = vld [vmem:[%s9 + $0x8] sm:$0xf]
    %v507 = vld [vmem:[%s9 + $0xc] sm:$0xf]
    %v508 = vld [vmem:[%s9 + $0x10] sm:$0xf]
    %v509 = vld [vmem:[%s9 + $0x14] sm:$0xf]
    %v510 = vld [vmem:[%s9 + $0x18] sm:$0xf]
    %v511 = vld [vmem:[%s9 + $0x1c] sm:$0xf]
    %v512 = vld [vmem:[%s9 + $0x20] sm:$0xf]
    %v513 = vld [vmem:[%s9 + $0x24] sm:$0xf]
    %v514 = vld [vmem:[%s9 + $0x28] sm:$0xf]
    %v515 = vld [vmem:[%s9 + $0x2c] sm:$0xf]
    %v516 = vld [vmem:[%s9 + $0x30] sm:$0xf]
    %v517 = vld [vmem:[%s9 + $0x34] sm:$0xf]
    %v518 = vld [vmem:[%s9 + $0x38] sm:$0xf]
    %v519 = vld [vmem:[%s9 + $0x3c] sm:$0xf]
    %v520 = vld [vmem:[%s10] sm:$0x1]
    %v522 = vlaneseq
    %v523 = vshrl.u32 %v522, 7
    %v524 = vsub.s32 0, %v523
    %v525 = vrot.slane %v520, %v524
    %v543 = vunpack.c.l.b16 %v504
    %v544 = vunpack.c.l.b16 %v505
    %v545 = vunpack.c.l.b16 %v506
    %v546 = vunpack.c.l.b16 %v507
    %v547 = vunpack.c.l.b16 %v508
    %v548 = vunpack.c.l.b16 %v509
    %v549 = vunpack.c.l.b16 %v510
    %v550 = vunpack.c.l.b16 %v511
    %v551 = vunpack.c.l.b16 %v512
    %v552 = vunpack.c.l.b16 %v513
    %v553 = vunpack.c.l.b16 %v514
    %v554 = vunpack.c.l.b16 %v515
    %v555 = vunpack.c.l.b16 %v516
    %v556 = vunpack.c.l.b16 %v517
    %v557 = vunpack.c.l.b16 %v518
    %v558 = vunpack.c.l.b16 %v519
    %v559 = vpack.c.b16 %v544, %v543
    %v560 = vpack.c.b16 %v546, %v545
    %v561 = vpack.c.b16 %v548, %v547
    %v562 = vpack.c.b16 %v550, %v549
    %v563 = vpack.c.b16 %v552, %v551
    %v564 = vpack.c.b16 %v554, %v553
    %v565 = vpack.c.b16 %v556, %v555
    %v566 = vpack.c.b16 %v558, %v557
    %575 = vmatprep.subr.bf16.mxu0 0
    %576 = vmatpush1.bf16.msra.mxu0 %v559
    %577 = vmatprep.subr.bf16.mxu0 0
    %578 = vmatpush1.bf16.msra.mxu0 %v560
    %579 = vmatprep.subr.bf16.mxu0 0
    %580 = vmatpush1.bf16.msra.mxu0 %v561
    %581 = vmatprep.subr.bf16.mxu0 0
    %582 = vmatpush1.bf16.msra.mxu0 %v562
    %583 = vmatprep.subr.bf16.mxu0 0
    %584 = vmatpush1.bf16.msra.mxu0 %v563
    %585 = vmatprep.subr.bf16.mxu0 0
    %586 = vmatpush1.bf16.msra.mxu0 %v564
    %587 = vmatprep.subr.bf16.mxu0 0
    %588 = vmatpush1.bf16.msra.mxu0 %v565
    %589 = vmatprep.subr.bf16.mxu0 0
    %590 = vmatpush1.bf16.msra.mxu0 %v566
    %591 = vmatprep.subr.bf16.mxu0 0
    %592 = vmatpush1.bf16.msra.mxu0 0
    %593 = vmatprep.subr.bf16.mxu0 0
    %594 = vmatpush1.bf16.msra.mxu0 0
    %595 = vmatprep.subr.bf16.mxu0 0
    %596 = vmatpush1.bf16.msra.mxu0 0
    %597 = vmatprep.subr.bf16.mxu0 0
    %598 = vmatpush1.bf16.msra.mxu0 0
    %599 = vmatprep.subr.bf16.mxu0 0
    %600 = vmatpush1.bf16.msra.mxu0 0
    %601 = vmatprep.subr.bf16.mxu0 0
    %602 = vmatpush1.bf16.msra.mxu0 0
    %603 = vmatprep.subr.bf16.mxu0 0
    %604 = vmatpush1.bf16.msra.mxu0 0
    %605 = vmatprep.subr.bf16.mxu0 0
    %606 = vmatpush1.bf16.msra.mxu0 0
    %607 = vmatprep.mubr.bf16.mxu0 0
    %608 = vmatmul.mubr.bf16.gmra.mrb[0].mxu0 %v503
    %v609 = vpop.f32.mrb[0].mxu0
    %v610 = vadd.f32 %v525, %v609
    %v611 = vpop.f32.mrb[0].mxu0
    %v612 = vpop.f32.mrb[0].mxu0
    %v613 = vpop.f32.mrb[0].mxu0
    %614 = vdwg.mxu0
    %v615 = vmax.f32 %v610, 0.0
    %v616 = vpack.c.bf16 %v615, %v615
    %v617 = vld [vmem:[%s11] sm:$0xf]
    %v618 = vld [vmem:[%s11 + $0x4] sm:$0xf]
    %v619 = vld [vmem:[%s11 + $0x8] sm:$0xf]
    %v620 = vld [vmem:[%s11 + $0xc] sm:$0xf]
    %v621 = vld [vmem:[%s11 + $0x10] sm:$0xf]
    %v622 = vld [vmem:[%s11 + $0x14] sm:$0xf]
    %v623 = vld [vmem:[%s11 + $0x18] sm:$0xf]
    %v624 = vld [vmem:[%s11 + $0x1c] sm:$0xf]
    %v625 = vld [vmem:[%s11 + $0x20] sm:$0xf]
    %v626 = vld [vmem:[%s11 + $0x24] sm:$0xf]
    %v627 = vld [vmem:[%s11 + $0x28] sm:$0xf]
    %v628 = vld [vmem:[%s11 + $0x2c] sm:$0xf]
    %v629 = vld [vmem:[%s11 + $0x30] sm:$0xf]
    %v630 = vld [vmem:[%s11 + $0x34] sm:$0xf]
    %v631 = vld [vmem:[%s11 + $0x38] sm:$0xf]
    %v632 = vld [vmem:[%s11 + $0x3c] sm:$0xf]
    %v633 = vld [vmem:[%s12] sm:$0x1]
    %v635 = vlaneseq
    %v636 = vshrl.u32 %v635, 7
    %v637 = vsub.s32 0, %v636
    %v638 = vrot.slane %v633, %v637
    %v656 = vunpack.c.l.b16 %v617
    %v657 = vunpack.c.l.b16 %v618
    %v658 = vunpack.c.l.b16 %v619
    %v659 = vunpack.c.l.b16 %v620
    %v660 = vunpack.c.l.b16 %v621
    %v661 = vunpack.c.l.b16 %v622
    %v662 = vunpack.c.l.b16 %v623
    %v663 = vunpack.c.l.b16 %v624
    %v664 = vunpack.c.l.b16 %v625
    %v665 = vunpack.c.l.b16 %v626
    %v666 = vunpack.c.l.b16 %v627
    %v667 = vunpack.c.l.b16 %v628
    %v668 = vunpack.c.l.b16 %v629
    %v669 = vunpack.c.l.b16 %v630
    %v670 = vunpack.c.l.b16 %v631
    %v671 = vunpack.c.l.b16 %v632
    %v672 = vpack.c.b16 %v657, %v656
    %v673 = vpack.c.b16 %v659, %v658
    %v674 = vpack.c.b16 %v661, %v660
    %v675 = vpack.c.b16 %v663, %v662
    %v676 = vpack.c.b16 %v665, %v664
    %v677 = vpack.c.b16 %v667, %v666
    %v678 = vpack.c.b16 %v669, %v668
    %v679 = vpack.c.b16 %v671, %v670
    %688 = vmatprep.subr.bf16.mxu0 0
    %689 = vmatpush1.bf16.msra.mxu0 %v672
    %690 = vmatprep.subr.bf16.mxu0 0
    %691 = vmatpush1.bf16.msra.mxu0 %v673
    %692 = vmatprep.subr.bf16.mxu0 0
    %693 = vmatpush1.bf16.msra.mxu0 %v674
    %694 = vmatprep.subr.bf16.mxu0 0
    %695 = vmatpush1.bf16.msra.mxu0 %v675
    %696 = vmatprep.subr.bf16.mxu0 0
    %697 = vmatpush1.bf16.msra.mxu0 %v676
    %698 = vmatprep.subr.bf16.mxu0 0
    %699 = vmatpush1.bf16.msra.mxu0 %v677
    %700 = vmatprep.subr.bf16.mxu0 0
    %701 = vmatpush1.bf16.msra.mxu0 %v678
    %702 = vmatprep.subr.bf16.mxu0 0
    %703 = vmatpush1.bf16.msra.mxu0 %v679
    %704 = vmatprep.subr.bf16.mxu0 0
    %705 = vmatpush1.bf16.msra.mxu0 0
    %706 = vmatprep.subr.bf16.mxu0 0
    %707 = vmatpush1.bf16.msra.mxu0 0
    %708 = vmatprep.subr.bf16.mxu0 0
    %709 = vmatpush1.bf16.msra.mxu0 0
    %710 = vmatprep.subr.bf16.mxu0 0
    %711 = vmatpush1.bf16.msra.mxu0 0
    %712 = vmatprep.subr.bf16.mxu0 0
    %713 = vmatpush1.bf16.msra.mxu0 0
    %714 = vmatprep.subr.bf16.mxu0 0
    %715 = vmatpush1.bf16.msra.mxu0 0
    %716 = vmatprep.subr.bf16.mxu0 0
    %717 = vmatpush1.bf16.msra.mxu0 0
    %718 = vmatprep.subr.bf16.mxu0 0
    %719 = vmatpush1.bf16.msra.mxu0 0
    %720 = vmatprep.mubr.bf16.mxu0 0
    %721 = vmatmul.mubr.bf16.gmra.mrb[0].mxu0 %v616
    %v722 = vpop.f32.mrb[0].mxu0
    %v723 = vadd.f32 %v638, %v722
    %v724 = vpop.f32.mrb[0].mxu0
    %v725 = vpop.f32.mrb[0].mxu0
    %v726 = vpop.f32.mrb[0].mxu0
    %727 = vdwg.mxu0
    %v728 = vxor.u32 %v723, 2147483648
    %v729 = vmul.f32 %v728, 1.442695
    %v730 = vpow.pop %v729
    %v731 = vadd.f32 %v730, 1.0
    %v732 = vrcp.pop %v731
    %v733 = vmul.f32 1.0, %v732
    %734 = vst [vmem:[#allocation4] sm:$0xff] %v733
    // Predicated region
    $region54: #{autoencoder_forward.1} parent=1 // pred_check
      _
    $region55: #{autoencoder_forward.1} parent=1 // pred_check_branch
      %736 = sbr.rel (0) target = $region57
    $region56: #{autoencoder_forward.1} parent=1 // pred_region
      %s738 = ssub.s32 128, 128
      %739 = vsyncadd [#allocation3], %s738
      %s741 = sshll.u32 [#allocation2], 4
      %s742 = int_to_ptr.vmem [resolvable:$true] %s741
      %744 = dma.vmem_to_hbm [thread:$0]  %s742, 128, %s13, [#allocation3]
    $region57: #{autoencoder_forward.1} parent=1 // pred_fallthru
      _
    // Predicated region
    $region58: #{autoencoder_forward.1} parent=1 // pred_check
      _
    $region59: #{autoencoder_forward.1} parent=1 // pred_check_branch
      %746 = sbr.rel (0) target = $region61
    $region60: #{autoencoder_forward.1} parent=1 // pred_region
      %s748 = ssub.s32 128, 128
      %749 = vsyncadd [#allocation5], %s748
      %s751 = sshll.u32 [#allocation4], 4
      %s752 = int_to_ptr.vmem [resolvable:$true] %s751
      %754 = dma.vmem_to_hbm [thread:$0]  %s752, 128, %s14, [#allocation5]
    $region61: #{autoencoder_forward.1} parent=1 // pred_fallthru
      _
    // Predicated region
    $region62: #{autoencoder_forward.1} parent=1 // pred_check
      _
    $region63: #{autoencoder_forward.1} parent=1 // pred_check_branch
      %756 = sbr.rel (0) target = $region65
    $region64: #{autoencoder_forward.1} parent=1 // pred_region
      %757 = dma.done [#allocation3], 128
    $region65: #{autoencoder_forward.1} parent=1 // pred_fallthru
      _
    // Predicated region
    $region66: #{autoencoder_forward.1} parent=1 // pred_check
      _
    $region67: #{autoencoder_forward.1} parent=1 // pred_check_branch
      %759 = sbr.rel (0) target = $region69
    $region68: #{autoencoder_forward.1} parent=1 // pred_region
      %760 = dma.done [#allocation5], 128
    $region69: #{autoencoder_forward.1} parent=1 // pred_fallthru
      _
    %761 = vsyncpa [#allocation3], 1
    %762 = vsyncpa [#allocation5], 1

</llo_original>
